<compile_context>
chip_gen: v6e
topology: v6e:2x2x1
jax: 0.10.0
libtpu: 0.0.40
codegen_flags: <defaults>
</compile_context>

<pallas_src>
import math

import jax
import jax.numpy as jnp
from jax.experimental import pallas as pl
from jax.experimental.pallas import tpu as pltpu


def _ff_kernel(x_ref, w1_ref, b1_ref, w2_ref, b2_ref, o_ref):
    """relu(x @ W1 + b1) @ W2 + b2 for one row tile. bf16 MXU feeds, f32 math."""
    x_bf = x_ref[...].astype(jnp.bfloat16)                        # (TM, E) bf16
    h = jnp.dot(x_bf, w1_ref[...],
                preferred_element_type=jnp.float32)               # (TM, FF) f32 acc
    h = jnp.maximum(h + b1_ref[...], 0.0)                         # bias + ReLU in f32 (VPU)
    y = jnp.dot(h.astype(jnp.bfloat16), w2_ref[...],
                preferred_element_type=jnp.float32)               # (TM, E) f32 acc
    o_ref[...] = (y + b2_ref[...]).astype(o_ref.dtype)


def ff_forward(x, w1, b1, w2, b2, *, tile_m=1024):
    """FF.forward.  x: (..., E) f32; w1: (E, FF); b1: (FF,); w2: (FF, E); b2: (E,)."""
    orig_shape = x.shape
    E = orig_shape[-1]
    FF = w1.shape[1]
    M = 1
    for d in orig_shape[:-1]:
        M *= int(d)

    x2 = x.reshape(M, E)
    w1_bf = w1.astype(jnp.bfloat16)         # pre-cast weights once in the wrapper
    w2_bf = w2.astype(jnp.bfloat16)
    b1_2 = b1.reshape(1, FF).astype(jnp.float32)
    b2_2 = b2.reshape(1, E).astype(jnp.float32)

    # Row-tile selection.  No HBM pad / slice: the ragged last block is masked
    # by Pallas (each output row only reads its own input row).
    if M <= tile_m:
        if M >= 512:
            # Split into >=2 grid steps so v7x's second TensorCore gets work.
            tm = ((M + 15) // 16) * 8       # ~half the rows, multiple of 8
        else:
            tm = M                          # single block == full row extent
    else:
        tm = tile_m                         # multiple of 8 by construction
    grid = (pl.cdiv(M, tm),)

    cost = pl.CostEstimate(
        flops=4 * M * E * FF,                                   # two M*E*FF matmuls
        transcendentals=0,
        bytes_accessed=2 * M * E * 4 + 2 * E * FF * 2 + (E + FF) * 4,
    )

    out = pl.pallas_call(
        _ff_kernel,
        out_shape=jax.ShapeDtypeStruct((M, E), x.dtype),
        grid=grid,
        in_specs=[
            pl.BlockSpec((tm, E), lambda i: (i, 0)),    # x row-tile (pipelined)
            pl.BlockSpec((E, FF), lambda i: (0, 0)),    # W1 (bf16, grid-constant)
            pl.BlockSpec((1, FF), lambda i: (0, 0)),    # b1 (f32)
            pl.BlockSpec((FF, E), lambda i: (0, 0)),    # W2 (bf16, grid-constant)
            pl.BlockSpec((1, E), lambda i: (0, 0)),     # b2 (f32)
        ],
        out_specs=pl.BlockSpec((tm, E), lambda i: (i, 0)),
        compiler_params=pltpu.CompilerParams(
            dimension_semantics=("parallel",)),         # shard row tiles across TCs
        cost_estimate=cost,
    )(x2, w1_bf, b1_2, w2_bf, b2_2)

    return out.reshape(orig_shape)


# ----------------------------- pure-JAX reference ---------------------------
def ff_reference(x, w1, b1, w2, b2):
    h = jnp.maximum(x @ w1 + b1, 0.0)
    return h @ w2 + b2


# ---------------------------------- main -------------------------------------
if __name__ == "__main__":
    # PDTSP model hyper-params (FF sits inside each encoder layer).
    E = 128          # embedding_dim
    FF_H = 512       # ff_hidden_dim
    B = 2            # batch
    P = 5            # customer_size (picks)
    N = 1 + 2 * P    # depot + picks + deliveries -> encoder sequence length

    key = jax.random.PRNGKey(0)
    ks = jax.random.split(key, 6)

    def lin_w(k, fan_in, shape):
        bound = 1.0 / math.sqrt(fan_in)
        return jax.random.uniform(k, shape, jnp.float32, -bound, bound)

    # nn.Linear(E, FF) / nn.Linear(FF, E) weights, stored as (in, out).
    w1 = lin_w(ks[0], E, (E, FF_H))
    b1 = lin_w(ks[1], E, (FF_H,))
    w2 = lin_w(ks[2], FF_H, (FF_H, E))
    b2 = lin_w(ks[3], FF_H, (E,))

    x = 0.5 * jax.random.normal(ks[4], (B, N, E), jnp.float32)

    y = ff_forward(x, w1, b1, w2, b2)
    y = jax.block_until_ready(y)

    y_ref = ff_reference(x, w1, b1, w2, b2)
    y_ref = jax.block_until_ready(y_ref)

    assert y.shape == (B, N, E)
    # bf16 MXU operands vs. the f32 reference -> loosened tolerance.
    err = float(jnp.max(jnp.abs(y - y_ref)))
    assert jnp.allclose(y, y_ref, atol=2e-2, rtol=2e-2), err

    print("KERNEL_OK")
</pallas_src>

<mosaic_0001>
module attributes {stable_mosaic.version = 11 : i64} {
  func.func @_ff_kernel(%arg0: i32, %arg1: memref<22x128xf32, #tpu.memory_space<vmem>>, %arg2: memref<128x512xbf16, #tpu.memory_space<vmem>>, %arg3: memref<1x512xf32, #tpu.memory_space<vmem>>, %arg4: memref<512x128xbf16, #tpu.memory_space<vmem>>, %arg5: memref<1x128xf32, #tpu.memory_space<vmem>>, %arg6: memref<22x128xf32, #tpu.memory_space<vmem>>) attributes {dimension_semantics = [#tpu.dimension_semantics<parallel>], iteration_bounds = array<i64: 1>, scalar_prefetch = 0 : i64, scratch_operands = 0 : i64, tpu.core_type = #tpu.core_type<tc>, window_params = [{transform_indices = @transform_0, window_bounds = array<i64: 22, 128>}, {pipeline_mode = #tpu.pipeline_mode<synchronous>, transform_indices = @transform_1, window_bounds = array<i64: 128, 512>}, {pipeline_mode = #tpu.pipeline_mode<synchronous>, transform_indices = @transform_2, window_bounds = array<i64: 1, 512>}, {pipeline_mode = #tpu.pipeline_mode<synchronous>, transform_indices = @transform_3, window_bounds = array<i64: 512, 128>}, {pipeline_mode = #tpu.pipeline_mode<synchronous>, transform_indices = @transform_4, window_bounds = array<i64: 1, 128>}, {transform_indices = @transform_5, window_bounds = array<i64: 22, 128>}]} {
    %c0 = arith.constant 0 : index
    %c0_0 = arith.constant 0 : index
    %0 = vector.load %arg1[%c0, %c0_0] : memref<22x128xf32, #tpu.memory_space<vmem>>, vector<22x128xf32>
    %1 = arith.truncf %0 : vector<22x128xf32> to vector<22x128xbf16>
    %c0_1 = arith.constant 0 : index
    %c0_2 = arith.constant 0 : index
    %2 = vector.load %arg2[%c0_1, %c0_2] : memref<128x512xbf16, #tpu.memory_space<vmem>>, vector<128x512xbf16>
    %cst = arith.constant dense<0.000000e+00> : vector<22x512xf32>
    %3 = tpu.matmul %1, %2, %cst {dimension_numbers = #tpu.dot_dimension_numbers<[1], [0], [0], [1], [0, 0, 1, 1], [], []>} : vector<22x128xbf16>, vector<128x512xbf16>, vector<22x512xf32> -> vector<22x512xf32>
    %c0_3 = arith.constant 0 : index
    %c0_4 = arith.constant 0 : index
    %4 = vector.load %arg3[%c0_3, %c0_4] : memref<1x512xf32, #tpu.memory_space<vmem>>, vector<1x512xf32>
    %5 = vector.broadcast %4 : vector<1x512xf32> to vector<22x512xf32>
    %6 = arith.addf %3, %5 : vector<22x512xf32>
    %cst_5 = arith.constant 0.000000e+00 : f32
    %7 = vector.broadcast %cst_5 : f32 to vector<22x512xf32>
    %8 = arith.maximumf %6, %7 : vector<22x512xf32>
    %9 = arith.truncf %8 : vector<22x512xf32> to vector<22x512xbf16>
    %c0_6 = arith.constant 0 : index
    %c0_7 = arith.constant 0 : index
    %10 = vector.load %arg4[%c0_6, %c0_7] : memref<512x128xbf16, #tpu.memory_space<vmem>>, vector<512x128xbf16>
    %cst_8 = arith.constant dense<0.000000e+00> : vector<22x128xf32>
    %11 = tpu.matmul %9, %10, %cst_8 {dimension_numbers = #tpu.dot_dimension_numbers<[1], [0], [0], [1], [0, 0, 1, 1], [], []>} : vector<22x512xbf16>, vector<512x128xbf16>, vector<22x128xf32> -> vector<22x128xf32>
    %c0_9 = arith.constant 0 : index
    %c0_10 = arith.constant 0 : index
    %12 = vector.load %arg5[%c0_9, %c0_10] : memref<1x128xf32, #tpu.memory_space<vmem>>, vector<1x128xf32>
    %13 = vector.broadcast %12 : vector<1x128xf32> to vector<22x128xf32>
    %14 = arith.addf %11, %13 : vector<22x128xf32>
    %c0_11 = arith.constant 0 : index
    %c0_12 = arith.constant 0 : index
    %15 = vector.load %arg6[%c0_11, %c0_12] : memref<22x128xf32, #tpu.memory_space<vmem>>, vector<22x128xf32>
    tpu.vector_store %arg6[%c0_11, %c0_12], %14 {strides = array<i32>} : memref<22x128xf32, #tpu.memory_space<vmem>>, vector<22x128xf32>,
    return
  }
  func.func @transform_0(%arg0: i32) -> (i32, i32) {
    %c0_i32 = arith.constant 0 : i32
    %c0_i32_0 = arith.constant 0 : i32
    return %arg0, %c0_i32 : i32, i32
  }
  func.func @transform_1(%arg0: i32) -> (i32, i32) {
    %c0_i32 = arith.constant 0 : i32
    %c0_i32_0 = arith.constant 0 : i32
    %c0_i32_1 = arith.constant 0 : i32
    return %c0_i32, %c0_i32_0 : i32, i32
  }
  func.func @transform_2(%arg0: i32) -> (i32, i32) {
    %c0_i32 = arith.constant 0 : i32
    %c0_i32_0 = arith.constant 0 : i32
    %c0_i32_1 = arith.constant 0 : i32
    return %c0_i32, %c0_i32_0 : i32, i32
  }
  func.func @transform_3(%arg0: i32) -> (i32, i32) {
    %c0_i32 = arith.constant 0 : i32
    %c0_i32_0 = arith.constant 0 : i32
    %c0_i32_1 = arith.constant 0 : i32
    return %c0_i32, %c0_i32_0 : i32, i32
  }
  func.func @transform_4(%arg0: i32) -> (i32, i32) {
    %c0_i32 = arith.constant 0 : i32
    %c0_i32_0 = arith.constant 0 : i32
    %c0_i32_1 = arith.constant 0 : i32
    return %c0_i32, %c0_i32_0 : i32, i32
  }
  func.func @transform_5(%arg0: i32) -> (i32, i32) {
    %c0_i32 = arith.constant 0 : i32
    %c0_i32_0 = arith.constant 0 : i32
    return %arg0, %c0_i32 : i32, i32
  }
}

</mosaic_0001>

<llo_original>
// kernel: tpu_custom_call.1
$region0: #{tpu_custom_call.1}
  #allocation0 [shape = 'u32[]', space=smem, size = 0x4, offset = 0x4, fixed_abs, tag = 'smem constant byte address 0x4 - core index']
  #allocation1 [shape = 'u32[144,128]{1,0:T(1,128)}', space=vmem, size = 0x12000, scoped, tag = 'internal scratch']
  %s0 = inlined_call_operand.hbm [shape: f32[22,128], index: 0, kind: input, shape index: {}]
  %s1 = inlined_call_operand.hbm [shape: bf16[128,512], index: 1, kind: input, shape index: {}]
  %s2 = inlined_call_operand.hbm [shape: f32[1,512], index: 2, kind: input, shape index: {}]
  %s3 = inlined_call_operand.hbm [shape: bf16[512,128], index: 3, kind: input, shape index: {}]
  %s4 = inlined_call_operand.vmem [shape: f32[1,128], index: 4, kind: input, shape index: {}]
  %s5 = inlined_call_operand.hbm [shape: f32[22,128], index: 5, kind: output, shape index: {}]
  %s6 = sld [smem:[#allocation0]]
  $region46: #{tpu_custom_call.1} parent=0
    _
  %s8 = ssub.s32 1, %s6
  %s9 = scalar_select 0, %s8, %s6
  $region1: #{tpu_custom_call.1} parent=0
    #allocation2 [shape = 'u8[12288]{0}', space=vmem, size = 0x3000, scoped, tag = 'input window, operand 0, single buffered']
    #allocation3 [shape = 's32[1]{0}', space=sflag, size = 0x4, scoped, tag = 'scoped memory for tpu_custom_call.1']
    #allocation4 [shape = 's32[1]{0}', space=sflag, size = 0x4, scoped, tag = 'scoped memory for tpu_custom_call.1']
    #allocation5 [shape = 'u8[131072]{0}', space=vmem, size = 0x20000, scoped, tag = 'input window, operand 1, single buffered']
    #allocation6 [shape = 's32[1]{0}', space=sflag, size = 0x4, scoped, tag = 'scoped memory for tpu_custom_call.1']
    #allocation7 [shape = 'u8[2048]{0}', space=vmem, size = 0x800, scoped, tag = 'input window, operand 2, single buffered']
    #allocation8 [shape = 'u8[131072]{0}', space=vmem, size = 0x20000, scoped, tag = 'input window, operand 3, single buffered']
    #allocation9 [shape = 's32[1]{0}', space=sflag, size = 0x4, scoped, tag = 'scoped memory for tpu_custom_call.1']
    #allocation10 [shape = 'u8[12288]{0}', space=vmem, size = 0x3000, scoped, tag = 'output window, operand 0, single buffered']
    %10 = vsyncpa [#allocation3], 0
    %11 = vsyncpa [#allocation6], 0
    %12 = vsyncpa [#allocation9], 0
    %13 = vsyncpa [#allocation4], 0
    // Predicated region
    $region2: #{tpu_custom_call.1} parent=1 // pred_check
      _
    $region3: #{tpu_custom_call.1} parent=1 // pred_check_branch
      %15 = sbr.rel (0) target = $region5
    $region4: #{tpu_custom_call.1} parent=1 // pred_region
      %s17 = ssub.s32 384, 384
      %18 = vsyncadd [#allocation3], %s17
      %s19 = sshll.u32 [#allocation2], 4
      %s20 = int_to_ptr.vmem [resolvable:$true] %s19
      %25 = dma.hbm_to_vmem [thread:$0]  %s0, 384, %s20, [#allocation3], 128, 128, 8
    $region5: #{tpu_custom_call.1} parent=1 // pred_fallthru
      _
    // Predicated region
    $region6: #{tpu_custom_call.1} parent=1 // pred_check
      _
    $region7: #{tpu_custom_call.1} parent=1 // pred_check_branch
      %27 = sbr.rel (0) target = $region9
    $region8: #{tpu_custom_call.1} parent=1 // pred_region
      %s29 = ssub.s32 4096, 4096
      %30 = vsyncadd [#allocation6], %s29
      %s31 = sshll.u32 [#allocation5], 4
      %s32 = int_to_ptr.vmem [resolvable:$true] %s31
      %37 = dma.hbm_to_vmem [thread:$0]  %s1, 4096, %s32, [#allocation6], 256, 256, 16
    $region9: #{tpu_custom_call.1} parent=1 // pred_fallthru
      _
    // Predicated region
    $region10: #{tpu_custom_call.1} parent=1 // pred_check
      _
    $region11: #{tpu_custom_call.1} parent=1 // pred_check_branch
      %39 = sbr.rel (0) target = $region13
    $region12: #{tpu_custom_call.1} parent=1 // pred_region
      %s41 = ssub.s32 64, 64
      %42 = vsyncadd [#allocation6], %s41
      %s44 = sshll.u32 [#allocation7], 4
      %s45 = int_to_ptr.vmem [resolvable:$true] %s44
      %47 = dma.hbm_to_vmem [thread:$0]  %s2, 64, %s45, [#allocation6]
    $region13: #{tpu_custom_call.1} parent=1 // pred_fallthru
      _
    // Predicated region
    $region14: #{tpu_custom_call.1} parent=1 // pred_check
      _
    $region15: #{tpu_custom_call.1} parent=1 // pred_check_branch
      %49 = sbr.rel (0) target = $region17
    $region16: #{tpu_custom_call.1} parent=1 // pred_region
      %s51 = ssub.s32 4096, 4096
      %52 = vsyncadd [#allocation9], %s51
      %s53 = sshll.u32 [#allocation8], 4
      %s54 = int_to_ptr.vmem [resolvable:$true] %s53
      %59 = dma.hbm_to_vmem [thread:$0]  %s3, 4096, %s54, [#allocation9], 64, 64, 4
    $region17: #{tpu_custom_call.1} parent=1 // pred_fallthru
      _
    // Predicated region
    $region18: #{tpu_custom_call.1} parent=1 // pred_check
      _
    $region19: #{tpu_custom_call.1} parent=1 // pred_check_branch
      %61 = sbr.rel (0) target = $region21
    $region20: #{tpu_custom_call.1} parent=1 // pred_region
      _
    $region21: #{tpu_custom_call.1} parent=1 // pred_fallthru
      _
    // Predicated region
    $region22: #{tpu_custom_call.1} parent=1 // pred_check
      _
    $region23: #{tpu_custom_call.1} parent=1 // pred_check_branch
      %63 = sbr.rel (0) target = $region25
    $region24: #{tpu_custom_call.1} parent=1 // pred_region
      %64 = dma.done [#allocation3], 384
    $region25: #{tpu_custom_call.1} parent=1 // pred_fallthru
      _
    // Predicated region
    $region26: #{tpu_custom_call.1} parent=1 // pred_check
      _
    $region27: #{tpu_custom_call.1} parent=1 // pred_check_branch
      %66 = sbr.rel (0) target = $region29
    $region28: #{tpu_custom_call.1} parent=1 // pred_region
      %67 = dma.done [#allocation6], 4096
    $region29: #{tpu_custom_call.1} parent=1 // pred_fallthru
      _
    // Predicated region
    $region30: #{tpu_custom_call.1} parent=1 // pred_check
      _
    $region31: #{tpu_custom_call.1} parent=1 // pred_check_branch
      %69 = sbr.rel (0) target = $region33
    $region32: #{tpu_custom_call.1} parent=1 // pred_region
      %70 = dma.done [#allocation6], 64
    $region33: #{tpu_custom_call.1} parent=1 // pred_fallthru
      _
    // Predicated region
    $region34: #{tpu_custom_call.1} parent=1 // pred_check
      _
    $region35: #{tpu_custom_call.1} parent=1 // pred_check_branch
      %72 = sbr.rel (0) target = $region37
    $region36: #{tpu_custom_call.1} parent=1 // pred_region
      %73 = dma.done [#allocation9], 4096
    $region37: #{tpu_custom_call.1} parent=1 // pred_fallthru
      _
    %v75 = vld [vmem:[#allocation2] sm:$0xff]
    %v76 = vld [vmem:[#allocation2 + $0x8] sm:$0xff]
    %v77 = vld [vmem:[#allocation2 + $0x10] sm:$0x3f]
    %v78 = vpack.c.bf16 %v76, %v75
    %v79 = vpack.c.bf16 %v77, %v77
    %v80 = vld [vmem:[#allocation5] sm:$0xff]
    %v81 = vld [vmem:[#allocation5 + $0x8] sm:$0xff]
    %v82 = vld [vmem:[#allocation5 + $0x10] sm:$0xff]
    %v83 = vld [vmem:[#allocation5 + $0x18] sm:$0xff]
    %v84 = vld [vmem:[#allocation5 + $0x20] sm:$0xff]
    %v85 = vld [vmem:[#allocation5 + $0x28] sm:$0xff]
    %v86 = vld [vmem:[#allocation5 + $0x30] sm:$0xff]
    %v87 = vld [vmem:[#allocation5 + $0x38] sm:$0xff]
    %v88 = vld [vmem:[#allocation5 + $0x40] sm:$0xff]
    %v89 = vld [vmem:[#allocation5 + $0x48] sm:$0xff]
    %v90 = vld [vmem:[#allocation5 + $0x50] sm:$0xff]
    %v91 = vld [vmem:[#allocation5 + $0x58] sm:$0xff]
    %v92 = vld [vmem:[#allocation5 + $0x60] sm:$0xff]
    %v93 = vld [vmem:[#allocation5 + $0x68] sm:$0xff]
    %v94 = vld [vmem:[#allocation5 + $0x70] sm:$0xff]
    %v95 = vld [vmem:[#allocation5 + $0x78] sm:$0xff]
    %v96 = vld [vmem:[#allocation5 + $0x80] sm:$0xff]
    %v97 = vld [vmem:[#allocation5 + $0x88] sm:$0xff]
    %v98 = vld [vmem:[#allocation5 + $0x90] sm:$0xff]
    %v99 = vld [vmem:[#allocation5 + $0x98] sm:$0xff]
    %v100 = vld [vmem:[#allocation5 + $0xa0] sm:$0xff]
    %v101 = vld [vmem:[#allocation5 + $0xa8] sm:$0xff]
    %v102 = vld [vmem:[#allocation5 + $0xb0] sm:$0xff]
    %v103 = vld [vmem:[#allocation5 + $0xb8] sm:$0xff]
    %v104 = vld [vmem:[#allocation5 + $0xc0] sm:$0xff]
    %v105 = vld [vmem:[#allocation5 + $0xc8] sm:$0xff]
    %v106 = vld [vmem:[#allocation5 + $0xd0] sm:$0xff]
    %v107 = vld [vmem:[#allocation5 + $0xd8] sm:$0xff]
    %v108 = vld [vmem:[#allocation5 + $0xe0] sm:$0xff]
    %v109 = vld [vmem:[#allocation5 + $0xe8] sm:$0xff]
    %v110 = vld [vmem:[#allocation5 + $0xf0] sm:$0xff]
    %v111 = vld [vmem:[#allocation5 + $0xf8] sm:$0xff]
    %v112 = vld [vmem:[#allocation7] sm:$0xf]
    %v114 = vlaneseq
    %v115 = vshrl.u32 %v114, 7
    %v116 = vsub.s32 0, %v115
    %v117 = vrot.slane %v112, %v116
    %v118 = vlaneseq
    %v119 = vshrl.u32 %v118, 7
    %v120 = vsub.s32 1, %v119
    %v121 = vrot.slane %v112, %v120
    %v122 = vlaneseq
    %v123 = vshrl.u32 %v122, 7
    %v124 = vsub.s32 2, %v123
    %v125 = vrot.slane %v112, %v124
    %v126 = vlaneseq
    %v127 = vshrl.u32 %v126, 7
    %v128 = vsub.s32 3, %v127
    %v129 = vrot.slane %v112, %v128
    %v166 = vunpack.c.l.b16 %v80
    %v167 = vunpack.c.h.b16 %v80
    %v168 = vunpack.c.l.b16 %v81
    %v169 = vunpack.c.h.b16 %v81
    %v170 = vunpack.c.l.b16 %v82
    %v171 = vunpack.c.h.b16 %v82
    %v172 = vunpack.c.l.b16 %v83
    %v173 = vunpack.c.h.b16 %v83
    %v174 = vunpack.c.l.b16 %v84
    %v175 = vunpack.c.h.b16 %v84
    %v176 = vunpack.c.l.b16 %v85
    %v177 = vunpack.c.h.b16 %v85
    %v178 = vunpack.c.l.b16 %v86
    %v179 = vunpack.c.h.b16 %v86
    %v180 = vunpack.c.l.b16 %v87
    %v181 = vunpack.c.h.b16 %v87
    %v182 = vunpack.c.l.b16 %v88
    %v183 = vunpack.c.h.b16 %v88
    %v184 = vunpack.c.l.b16 %v89
    %v185 = vunpack.c.h.b16 %v89
    %v186 = vunpack.c.l.b16 %v90
    %v187 = vunpack.c.h.b16 %v90
    %v188 = vunpack.c.l.b16 %v91
    %v189 = vunpack.c.h.b16 %v91
    %v190 = vunpack.c.l.b16 %v92
    %v191 = vunpack.c.h.b16 %v92
    %v192 = vunpack.c.l.b16 %v93
    %v193 = vunpack.c.h.b16 %v93
    %v194 = vunpack.c.l.b16 %v94
    %v195 = vunpack.c.h.b16 %v94
    %v196 = vunpack.c.l.b16 %v95
    %v197 = vunpack.c.h.b16 %v95
    %v198 = vunpack.c.l.b16 %v96
    %v199 = vunpack.c.h.b16 %v96
    %v200 = vunpack.c.l.b16 %v97
    %v201 = vunpack.c.h.b16 %v97
    %v202 = vunpack.c.l.b16 %v98
    %v203 = vunpack.c.h.b16 %v98
    %v204 = vunpack.c.l.b16 %v99
    %v205 = vunpack.c.h.b16 %v99
    %v206 = vunpack.c.l.b16 %v100
    %v207 = vunpack.c.h.b16 %v100
    %v208 = vunpack.c.l.b16 %v101
    %v209 = vunpack.c.h.b16 %v101
    %v210 = vunpack.c.l.b16 %v102
    %v211 = vunpack.c.h.b16 %v102
    %v212 = vunpack.c.l.b16 %v103
    %v213 = vunpack.c.h.b16 %v103
    %v214 = vunpack.c.l.b16 %v104
    %v215 = vunpack.c.h.b16 %v104
    %v216 = vunpack.c.l.b16 %v105
    %v217 = vunpack.c.h.b16 %v105
    %v218 = vunpack.c.l.b16 %v106
    %v219 = vunpack.c.h.b16 %v106
    %v220 = vunpack.c.l.b16 %v107
    %v221 = vunpack.c.h.b16 %v107
    %v222 = vunpack.c.l.b16 %v108
    %v223 = vunpack.c.h.b16 %v108
    %v224 = vunpack.c.l.b16 %v109
    %v225 = vunpack.c.h.b16 %v109
    %v226 = vunpack.c.l.b16 %v110
    %v227 = vunpack.c.h.b16 %v110
    %v228 = vunpack.c.l.b16 %v111
    %v229 = vunpack.c.h.b16 %v111
    %v230 = vpack.c.b16 %v170, %v166
    %v231 = vpack.c.b16 %v171, %v167
    %v232 = vpack.c.b16 %v172, %v168
    %v233 = vpack.c.b16 %v173, %v169
    %v234 = vpack.c.b16 %v178, %v174
    %v235 = vpack.c.b16 %v179, %v175
    %v236 = vpack.c.b16 %v180, %v176
    %v237 = vpack.c.b16 %v181, %v177
    %v238 = vpack.c.b16 %v186, %v182
    %v239 = vpack.c.b16 %v187, %v183
    %v240 = vpack.c.b16 %v188, %v184
    %v241 = vpack.c.b16 %v189, %v185
    %v242 = vpack.c.b16 %v194, %v190
    %v243 = vpack.c.b16 %v195, %v191
    %v244 = vpack.c.b16 %v196, %v192
    %v245 = vpack.c.b16 %v197, %v193
    %v246 = vpack.c.b16 %v202, %v198
    %v247 = vpack.c.b16 %v203, %v199
    %v248 = vpack.c.b16 %v204, %v200
    %v249 = vpack.c.b16 %v205, %v201
    %v250 = vpack.c.b16 %v210, %v206
    %v251 = vpack.c.b16 %v211, %v207
    %v252 = vpack.c.b16 %v212, %v208
    %v253 = vpack.c.b16 %v213, %v209
    %v254 = vpack.c.b16 %v218, %v214
    %v255 = vpack.c.b16 %v219, %v215
    %v256 = vpack.c.b16 %v220, %v216
    %v257 = vpack.c.b16 %v221, %v217
    %v258 = vpack.c.b16 %v226, %v222
    %v259 = vpack.c.b16 %v227, %v223
    %v260 = vpack.c.b16 %v228, %v224
    %v261 = vpack.c.b16 %v229, %v225
    %294 = vmatprep.subr.bf16.mxu0 %v259
    %295 = vmatpush1.bf16.msra.mxu0 %v258
    %296 = vmatprep.subr.bf16.mxu0 %v255
    %297 = vmatpush1.bf16.msra.mxu0 %v254
    %298 = vmatprep.subr.bf16.mxu0 %v251
    %299 = vmatpush1.bf16.msra.mxu0 %v250
    %300 = vmatprep.subr.bf16.mxu0 %v247
    %301 = vmatpush1.bf16.msra.mxu0 %v246
    %302 = vmatprep.subr.bf16.mxu0 %v243
    %303 = vmatpush1.bf16.msra.mxu0 %v242
    %304 = vmatprep.subr.bf16.mxu0 %v239
    %305 = vmatpush1.bf16.msra.mxu0 %v238
    %306 = vmatprep.subr.bf16.mxu0 %v235
    %307 = vmatpush1.bf16.msra.mxu0 %v234
    %308 = vmatprep.subr.bf16.mxu0 %v231
    %309 = vmatpush1.bf16.msra.mxu0 %v230
    %310 = vmatprep.subr.bf16.mxu0 0
    %311 = vmatpush2.bf16.msra.mxu0 0
    %312 = vmatprep.subr.bf16.mxu0 0
    %313 = vmatpush2.bf16.msra.mxu0 0
    %314 = vmatprep.subr.bf16.mxu0 0
    %315 = vmatpush2.bf16.msra.mxu0 0
    %316 = vmatprep.subr.bf16.mxu0 0
    %317 = vmatpush2.bf16.msra.mxu0 0
    %318 = vmatprep.subr.bf16.mxu0 0
    %319 = vmatpush2.bf16.msra.mxu0 0
    %320 = vmatprep.subr.bf16.mxu0 0
    %321 = vmatpush2.bf16.msra.mxu0 0
    %322 = vmatprep.subr.bf16.mxu0 0
    %323 = vmatpush2.bf16.msra.mxu0 0
    %324 = vmatprep.subr.bf16.mxu0 0
    %325 = vmatpush2.bf16.msra.mxu0 0
    %326 = vmatprep.mubr.bf16.mxu0 0
    %327 = vmatmul.mubr.bf16.gmra.mxu0 %v78
    %v328 = vpop.f32.mrf.mxu0
    %v329 = vadd.f32 %v117, %v328
    %v330 = vpop.f32.mrf.mxu0
    %v331 = vadd.f32 %v121, %v330
    %v332 = vpop.f32.mrf.mxu0
    %v333 = vadd.f32 %v117, %v332
    %v334 = vpop.f32.mrf.mxu0
    %v335 = vadd.f32 %v121, %v334
    %336 = vmatprep.mubr.bf16.mxu0 0
    %337 = vmatmul.mubr.bf16.gmra.mxu0 %v79
    %v338 = vpop.f32.mrf.mxu0
    %v339 = vadd.f32 %v117, %v338
    %v340 = vpop.f32.mrf.mxu0
    %v341 = vadd.f32 %v121, %v340
    %v342 = vpop.f32.mrf.mxu0
    %v343 = vpop.f32.mrf.mxu0
    %344 = vdwg.mxu0
    %345 = vmatprep.subr.bf16.mxu0 %v261
    %346 = vmatpush1.bf16.msra.mxu0 %v260
    %347 = vmatprep.subr.bf16.mxu0 %v257
    %348 = vmatpush1.bf16.msra.mxu0 %v256
    %349 = vmatprep.subr.bf16.mxu0 %v253
    %350 = vmatpush1.bf16.msra.mxu0 %v252
    %351 = vmatprep.subr.bf16.mxu0 %v249
    %352 = vmatpush1.bf16.msra.mxu0 %v248
    %353 = vmatprep.subr.bf16.mxu0 %v245
    %354 = vmatpush1.bf16.msra.mxu0 %v244
    %355 = vmatprep.subr.bf16.mxu0 %v241
    %356 = vmatpush1.bf16.msra.mxu0 %v240
    %357 = vmatprep.subr.bf16.mxu0 %v237
    %358 = vmatpush1.bf16.msra.mxu0 %v236
    %359 = vmatprep.subr.bf16.mxu0 %v233
    %360 = vmatpush1.bf16.msra.mxu0 %v232
    %361 = vmatprep.subr.bf16.mxu0 0
    %362 = vmatpush2.bf16.msra.mxu0 0
    %363 = vmatprep.subr.bf16.mxu0 0
    %364 = vmatpush2.bf16.msra.mxu0 0
    %365 = vmatprep.subr.bf16.mxu0 0
    %366 = vmatpush2.bf16.msra.mxu0 0
    %367 = vmatprep.subr.bf16.mxu0 0
    %368 = vmatpush2.bf16.msra.mxu0 0
    %369 = vmatprep.subr.bf16.mxu0 0
    %370 = vmatpush2.bf16.msra.mxu0 0
    %371 = vmatprep.subr.bf16.mxu0 0
    %372 = vmatpush2.bf16.msra.mxu0 0
    %373 = vmatprep.subr.bf16.mxu0 0
    %374 = vmatpush2.bf16.msra.mxu0 0
    %375 = vmatprep.subr.bf16.mxu0 0
    %376 = vmatpush2.bf16.msra.mxu0 0
    %377 = vmatprep.mubr.bf16.mxu0 0
    %378 = vmatmul.mubr.bf16.gmra.mxu0 %v78
    %v379 = vpop.f32.mrf.mxu0
    %v380 = vadd.f32 %v125, %v379
    %v381 = vpop.f32.mrf.mxu0
    %v382 = vadd.f32 %v129, %v381
    %v383 = vpop.f32.mrf.mxu0
    %v384 = vadd.f32 %v125, %v383
    %v385 = vpop.f32.mrf.mxu0
    %v386 = vadd.f32 %v129, %v385
    %387 = vmatprep.mubr.bf16.mxu0 0
    %388 = vmatmul.mubr.bf16.gmra.mxu0 %v79
    %v389 = vpop.f32.mrf.mxu0
    %v390 = vadd.f32 %v125, %v389
    %v391 = vpop.f32.mrf.mxu0
    %v392 = vadd.f32 %v129, %v391
    %v393 = vpop.f32.mrf.mxu0
    %v394 = vpop.f32.mrf.mxu0
    %395 = vdwg.mxu0
    %v396 = vmax.f32 %v329, 0.0
    %v397 = vmax.f32 %v331, 0.0
    %v398 = vmax.f32 %v380, 0.0
    %v399 = vmax.f32 %v382, 0.0
    %v400 = vmax.f32 %v333, 0.0
    %v401 = vmax.f32 %v335, 0.0
    %v402 = vmax.f32 %v384, 0.0
    %v403 = vmax.f32 %v386, 0.0
    %v404 = vmax.f32 %v339, 0.0
    %v405 = vmax.f32 %v341, 0.0
    %v406 = vmax.f32 %v390, 0.0
    %v407 = vmax.f32 %v392, 0.0
    %v408 = vpack.c.bf16 %v400, %v396
    %v409 = vpack.c.bf16 %v401, %v397
    %v410 = vpack.c.bf16 %v402, %v398
    %v411 = vpack.c.bf16 %v403, %v399
    %v412 = vpack.c.bf16 %v404, %v404
    %v413 = vpack.c.bf16 %v405, %v405
    %v414 = vpack.c.bf16 %v406, %v406
    %v415 = vpack.c.bf16 %v407, %v407
    %v416 = vld [vmem:[#allocation8] sm:$0xf]
    %v417 = vld [vmem:[#allocation8 + $0x4] sm:$0xf]
    %v418 = vld [vmem:[#allocation8 + $0x8] sm:$0xf]
    %v419 = vld [vmem:[#allocation8 + $0xc] sm:$0xf]
    %v420 = vld [vmem:[#allocation8 + $0x10] sm:$0xf]
    %v421 = vld [vmem:[#allocation8 + $0x14] sm:$0xf]
    %v422 = vld [vmem:[#allocation8 + $0x18] sm:$0xf]
    %v423 = vld [vmem:[#allocation8 + $0x1c] sm:$0xf]
    %v424 = vld [vmem:[#allocation8 + $0x20] sm:$0xf]
    %v425 = vld [vmem:[#allocation8 + $0x24] sm:$0xf]
    %v426 = vld [vmem:[#allocation8 + $0x28] sm:$0xf]
    %v427 = vld [vmem:[#allocation8 + $0x2c] sm:$0xf]
    %v428 = vld [vmem:[#allocation8 + $0x30] sm:$0xf]
    %v429 = vld [vmem:[#allocation8 + $0x34] sm:$0xf]
    %v430 = vld [vmem:[#allocation8 + $0x38] sm:$0xf]
    %v431 = vld [vmem:[#allocation8 + $0x3c] sm:$0xf]
    %v432 = vld [vmem:[#allocation8 + $0x40] sm:$0xf]
    %v433 = vld [vmem:[#allocation8 + $0x44] sm:$0xf]
    %v434 = vld [vmem:[#allocation8 + $0x48] sm:$0xf]
    %v435 = vld [vmem:[#allocation8 + $0x4c] sm:$0xf]
    %v436 = vld [vmem:[#allocation8 + $0x50] sm:$0xf]
    %v437 = vld [vmem:[#allocation8 + $0x54] sm:$0xf]
    %v438 = vld [vmem:[#allocation8 + $0x58] sm:$0xf]
    %v439 = vld [vmem:[#allocation8 + $0x5c] sm:$0xf]
    %v440 = vld [vmem:[#allocation8 + $0x60] sm:$0xf]
    %v441 = vld [vmem:[#allocation8 + $0x64] sm:$0xf]
    %v442 = vld [vmem:[#allocation8 + $0x68] sm:$0xf]
    %v443 = vld [vmem:[#allocation8 + $0x6c] sm:$0xf]
    %v444 = vld [vmem:[#allocation8 + $0x70] sm:$0xf]
    %v445 = vld [vmem:[#allocation8 + $0x74] sm:$0xf]
    %v446 = vld [vmem:[#allocation8 + $0x78] sm:$0xf]
    %v447 = vld [vmem:[#allocation8 + $0x7c] sm:$0xf]
    %v448 = vld [vmem:[#allocation8 + $0x80] sm:$0xf]
    %v449 = vld [vmem:[#allocation8 + $0x84] sm:$0xf]
    %v450 = vld [vmem:[#allocation8 + $0x88] sm:$0xf]
    %v451 = vld [vmem:[#allocation8 + $0x8c] sm:$0xf]
    %v452 = vld [vmem:[#allocation8 + $0x90] sm:$0xf]
    %v453 = vld [vmem:[#allocation8 + $0x94] sm:$0xf]
    %v454 = vld [vmem:[#allocation8 + $0x98] sm:$0xf]
    %v455 = vld [vmem:[#allocation8 + $0x9c] sm:$0xf]
    %v456 = vld [vmem:[#allocation8 + $0xa0] sm:$0xf]
    %v457 = vld [vmem:[#allocation8 + $0xa4] sm:$0xf]
    %v458 = vld [vmem:[#allocation8 + $0xa8] sm:$0xf]
    %v459 = vld [vmem:[#allocation8 + $0xac] sm:$0xf]
    %v460 = vld [vmem:[#allocation8 + $0xb0] sm:$0xf]
    %v461 = vld [vmem:[#allocation8 + $0xb4] sm:$0xf]
    %v462 = vld [vmem:[#allocation8 + $0xb8] sm:$0xf]
    %v463 = vld [vmem:[#allocation8 + $0xbc] sm:$0xf]
    %v464 = vld [vmem:[#allocation8 + $0xc0] sm:$0xf]
    %v465 = vld [vmem:[#allocation8 + $0xc4] sm:$0xf]
    %v466 = vld [vmem:[#allocation8 + $0xc8] sm:$0xf]
    %v467 = vld [vmem:[#allocation8 + $0xcc] sm:$0xf]
    %v468 = vld [vmem:[#allocation8 + $0xd0] sm:$0xf]
    %v469 = vld [vmem:[#allocation8 + $0xd4] sm:$0xf]
    %v470 = vld [vmem:[#allocation8 + $0xd8] sm:$0xf]
    %v471 = vld [vmem:[#allocation8 + $0xdc] sm:$0xf]
    %v472 = vld [vmem:[#allocation8 + $0xe0] sm:$0xf]
    %v473 = vld [vmem:[#allocation8 + $0xe4] sm:$0xf]
    %v474 = vld [vmem:[#allocation8 + $0xe8] sm:$0xf]
    %v475 = vld [vmem:[#allocation8 + $0xec] sm:$0xf]
    %v476 = vld [vmem:[#allocation8 + $0xf0] sm:$0xf]
    %v477 = vld [vmem:[#allocation8 + $0xf4] sm:$0xf]
    %v478 = vld [vmem:[#allocation8 + $0xf8] sm:$0xf]
    %v479 = vld [vmem:[#allocation8 + $0xfc] sm:$0xf]
    %v480 = vld [vmem:[%s4] sm:$0x1]
    %v482 = vlaneseq
    %v483 = vshrl.u32 %v482, 7
    %v484 = vsub.s32 0, %v483
    %v485 = vrot.slane %v480, %v484
    %v551 = vunpack.c.l.b16 %v416
    %v552 = vunpack.c.l.b16 %v417
    %v553 = vunpack.c.l.b16 %v418
    %v554 = vunpack.c.l.b16 %v419
    %v555 = vunpack.c.l.b16 %v420
    %v556 = vunpack.c.l.b16 %v421
    %v557 = vunpack.c.l.b16 %v422
    %v558 = vunpack.c.l.b16 %v423
    %v559 = vunpack.c.l.b16 %v424
    %v560 = vunpack.c.l.b16 %v425
    %v561 = vunpack.c.l.b16 %v426
    %v562 = vunpack.c.l.b16 %v427
    %v563 = vunpack.c.l.b16 %v428
    %v564 = vunpack.c.l.b16 %v429
    %v565 = vunpack.c.l.b16 %v430
    %v566 = vunpack.c.l.b16 %v431
    %v567 = vunpack.c.l.b16 %v432
    %v568 = vunpack.c.l.b16 %v433
    %v569 = vunpack.c.l.b16 %v434
    %v570 = vunpack.c.l.b16 %v435
    %v571 = vunpack.c.l.b16 %v436
    %v572 = vunpack.c.l.b16 %v437
    %v573 = vunpack.c.l.b16 %v438
    %v574 = vunpack.c.l.b16 %v439
    %v575 = vunpack.c.l.b16 %v440
    %v576 = vunpack.c.l.b16 %v441
    %v577 = vunpack.c.l.b16 %v442
    %v578 = vunpack.c.l.b16 %v443
    %v579 = vunpack.c.l.b16 %v444
    %v580 = vunpack.c.l.b16 %v445
    %v581 = vunpack.c.l.b16 %v446
    %v582 = vunpack.c.l.b16 %v447
    %v583 = vunpack.c.l.b16 %v448
    %v584 = vunpack.c.l.b16 %v449
    %v585 = vunpack.c.l.b16 %v450
    %v586 = vunpack.c.l.b16 %v451
    %v587 = vunpack.c.l.b16 %v452
    %v588 = vunpack.c.l.b16 %v453
    %v589 = vunpack.c.l.b16 %v454
    %v590 = vunpack.c.l.b16 %v455
    %v591 = vunpack.c.l.b16 %v456
    %v592 = vunpack.c.l.b16 %v457
    %v593 = vunpack.c.l.b16 %v458
    %v594 = vunpack.c.l.b16 %v459
    %v595 = vunpack.c.l.b16 %v460
    %v596 = vunpack.c.l.b16 %v461
    %v597 = vunpack.c.l.b16 %v462
    %v598 = vunpack.c.l.b16 %v463
    %v599 = vunpack.c.l.b16 %v464
    %v600 = vunpack.c.l.b16 %v465
    %v601 = vunpack.c.l.b16 %v466
    %v602 = vunpack.c.l.b16 %v467
    %v603 = vunpack.c.l.b16 %v468
    %v604 = vunpack.c.l.b16 %v469
    %v605 = vunpack.c.l.b16 %v470
    %v606 = vunpack.c.l.b16 %v471
    %v607 = vunpack.c.l.b16 %v472
    %v608 = vunpack.c.l.b16 %v473
    %v609 = vunpack.c.l.b16 %v474
    %v610 = vunpack.c.l.b16 %v475
    %v611 = vunpack.c.l.b16 %v476
    %v612 = vunpack.c.l.b16 %v477
    %v613 = vunpack.c.l.b16 %v478
    %v614 = vunpack.c.l.b16 %v479
    %v615 = vpack.c.b16 %v552, %v551
    %v616 = vpack.c.b16 %v554, %v553
    %v617 = vpack.c.b16 %v556, %v555
    %v618 = vpack.c.b16 %v558, %v557
    %v619 = vpack.c.b16 %v560, %v559
    %v620 = vpack.c.b16 %v562, %v561
    %v621 = vpack.c.b16 %v564, %v563
    %v622 = vpack.c.b16 %v566, %v565
    %v623 = vpack.c.b16 %v568, %v567
    %v624 = vpack.c.b16 %v570, %v569
    %v625 = vpack.c.b16 %v572, %v571
    %v626 = vpack.c.b16 %v574, %v573
    %v627 = vpack.c.b16 %v576, %v575
    %v628 = vpack.c.b16 %v578, %v577
    %v629 = vpack.c.b16 %v580, %v579
    %v630 = vpack.c.b16 %v582, %v581
    %v631 = vpack.c.b16 %v584, %v583
    %v632 = vpack.c.b16 %v586, %v585
    %v633 = vpack.c.b16 %v588, %v587
    %v634 = vpack.c.b16 %v590, %v589
    %v635 = vpack.c.b16 %v592, %v591
    %v636 = vpack.c.b16 %v594, %v593
    %v637 = vpack.c.b16 %v596, %v595
    %v638 = vpack.c.b16 %v598, %v597
    %v639 = vpack.c.b16 %v600, %v599
    %v640 = vpack.c.b16 %v602, %v601
    %v641 = vpack.c.b16 %v604, %v603
    %v642 = vpack.c.b16 %v606, %v605
    %v643 = vpack.c.b16 %v608, %v607
    %v644 = vpack.c.b16 %v610, %v609
    %v645 = vpack.c.b16 %v612, %v611
    %v646 = vpack.c.b16 %v614, %v613
    %679 = vmatprep.subr.bf16.mxu0 0
    %680 = vmatpush1.bf16.msra.mxu0 %v622
    %681 = vmatprep.subr.bf16.mxu0 0
    %682 = vmatpush1.bf16.msra.mxu0 %v621
    %683 = vmatprep.subr.bf16.mxu0 0
    %684 = vmatpush1.bf16.msra.mxu0 %v620
    %685 = vmatprep.subr.bf16.mxu0 0
    %686 = vmatpush1.bf16.msra.mxu0 %v619
    %687 = vmatprep.subr.bf16.mxu0 0
    %688 = vmatpush1.bf16.msra.mxu0 %v618
    %689 = vmatprep.subr.bf16.mxu0 0
    %690 = vmatpush1.bf16.msra.mxu0 %v617
    %691 = vmatprep.subr.bf16.mxu0 0
    %692 = vmatpush1.bf16.msra.mxu0 %v616
    %693 = vmatprep.subr.bf16.mxu0 0
    %694 = vmatpush1.bf16.msra.mxu0 %v615
    %695 = vmatprep.subr.bf16.mxu0 0
    %696 = vmatpush2.bf16.msra.mxu0 %v630
    %697 = vmatprep.subr.bf16.mxu0 0
    %698 = vmatpush2.bf16.msra.mxu0 %v629
    %699 = vmatprep.subr.bf16.mxu0 0
    %700 = vmatpush2.bf16.msra.mxu0 %v628
    %701 = vmatprep.subr.bf16.mxu0 0
    %702 = vmatpush2.bf16.msra.mxu0 %v627
    %703 = vmatprep.subr.bf16.mxu0 0
    %704 = vmatpush2.bf16.msra.mxu0 %v626
    %705 = vmatprep.subr.bf16.mxu0 0
    %706 = vmatpush2.bf16.msra.mxu0 %v625
    %707 = vmatprep.subr.bf16.mxu0 0
    %708 = vmatpush2.bf16.msra.mxu0 %v624
    %709 = vmatprep.subr.bf16.mxu0 0
    %710 = vmatpush2.bf16.msra.mxu0 %v623
    %711 = vmatprep.mubr.bf16.mxu0 %v409
    %712 = vmatmul.mubr.bf16.gmra.mxu0 %v408
    %v713 = vpop.f32.mrf.mxu0
    %v714 = vadd.f32 %v485, %v713
    %v715 = vpop.f32.mrf.mxu0
    %v716 = vpop.f32.mrf.mxu0
    %v717 = vadd.f32 %v485, %v716
    %v718 = vpop.f32.mrf.mxu0
    %719 = vmatprep.mubr.bf16.mxu0 %v413
    %720 = vmatmul.mubr.bf16.gmra.mxu0 %v412
    %v721 = vpop.f32.mrf.mxu0
    %v722 = vadd.f32 %v485, %v721
    %v723 = vpop.f32.mrf.mxu0
    %v724 = vpop.f32.mrf.mxu0
    %v725 = vpop.f32.mrf.mxu0
    %726 = vdwg.mxu0
    %727 = vmatprep.subr.bf16.mxu0 0
    %728 = vmatpush1.bf16.msra.mxu0 %v638
    %729 = vmatprep.subr.bf16.mxu0 0
    %730 = vmatpush1.bf16.msra.mxu0 %v637
    %731 = vmatprep.subr.bf16.mxu0 0
    %732 = vmatpush1.bf16.msra.mxu0 %v636
    %733 = vmatprep.subr.bf16.mxu0 0
    %734 = vmatpush1.bf16.msra.mxu0 %v635
    %735 = vmatprep.subr.bf16.mxu0 0
    %736 = vmatpush1.bf16.msra.mxu0 %v634
    %737 = vmatprep.subr.bf16.mxu0 0
    %738 = vmatpush1.bf16.msra.mxu0 %v633
    %739 = vmatprep.subr.bf16.mxu0 0
    %740 = vmatpush1.bf16.msra.mxu0 %v632
    %741 = vmatprep.subr.bf16.mxu0 0
    %742 = vmatpush1.bf16.msra.mxu0 %v631
    %743 = vmatprep.subr.bf16.mxu0 0
    %744 = vmatpush2.bf16.msra.mxu0 %v646
    %745 = vmatprep.subr.bf16.mxu0 0
    %746 = vmatpush2.bf16.msra.mxu0 %v645
    %747 = vmatprep.subr.bf16.mxu0 0
    %748 = vmatpush2.bf16.msra.mxu0 %v644
    %749 = vmatprep.subr.bf16.mxu0 0
    %750 = vmatpush2.bf16.msra.mxu0 %v643
    %751 = vmatprep.subr.bf16.mxu0 0
    %752 = vmatpush2.bf16.msra.mxu0 %v642
    %753 = vmatprep.subr.bf16.mxu0 0
    %754 = vmatpush2.bf16.msra.mxu0 %v641
    %755 = vmatprep.subr.bf16.mxu0 0
    %756 = vmatpush2.bf16.msra.mxu0 %v640
    %757 = vmatprep.subr.bf16.mxu0 0
    %758 = vmatpush2.bf16.msra.mxu0 %v639
    %759 = vmatprep.mubr.bf16.mxu0 %v411
    %760 = vmatmul.mubr.bf16.gmra.mxu0 %v410
    %v761 = vpop.f32.mrf.mxu0
    %v762 = vadd.f32 %v714, %v761
    %v763 = vpop.f32.mrf.mxu0
    %v764 = vpop.f32.mrf.mxu0
    %v765 = vadd.f32 %v717, %v764
    %v766 = vpop.f32.mrf.mxu0
    %767 = vmatprep.mubr.bf16.mxu0 %v415
    %768 = vmatmul.mubr.bf16.gmra.mxu0 %v414
    %v769 = vpop.f32.mrf.mxu0
    %v770 = vadd.f32 %v722, %v769
    %v771 = vpop.f32.mrf.mxu0
    %v772 = vpop.f32.mrf.mxu0
    %v773 = vpop.f32.mrf.mxu0
    %774 = vdwg.mxu0
    %775 = vst [vmem:[#allocation10] sm:$0xff] %v762
    %776 = vst [vmem:[#allocation10 + $0x8] sm:$0xff] %v765
    %777 = vst [vmem:[#allocation10 + $0x10] sm:$0x3f] %v770
    // Predicated region
    $region38: #{tpu_custom_call.1} parent=1 // pred_check
      _
    $region39: #{tpu_custom_call.1} parent=1 // pred_check_branch
      %779 = sbr.rel (0) target = $region41
    $region40: #{tpu_custom_call.1} parent=1 // pred_region
      %s781 = ssub.s32 384, 384
      %782 = vsyncadd [#allocation4], %s781
      %s783 = sshll.u32 [#allocation10], 4
      %s784 = int_to_ptr.vmem [resolvable:$true] %s783
      %789 = dma.vmem_to_hbm [thread:$0]  %s784, 384, %s5, [#allocation4], 128, 128, 8
    $region41: #{tpu_custom_call.1} parent=1 // pred_fallthru
      _
    // Predicated region
    $region42: #{tpu_custom_call.1} parent=1 // pred_check
      _
    $region43: #{tpu_custom_call.1} parent=1 // pred_check_branch
      %791 = sbr.rel (0) target = $region45
    $region44: #{tpu_custom_call.1} parent=1 // pred_region
      %792 = dma.done [#allocation4], 384
    $region45: #{tpu_custom_call.1} parent=1 // pred_fallthru
      _
    %793 = vsyncpa [#allocation3], 1
    %794 = vsyncpa [#allocation6], 1
    %795 = vsyncpa [#allocation9], 1
    %796 = vsyncpa [#allocation4], 1

</llo_original>
